<compile_context>
chip_gen: v6e
topology: v6e:2x2x1
jax: 0.10.0
libtpu: 0.0.40
codegen_flags: <defaults>
</compile_context>

<pallas_src>
import jax
import jax.numpy as jnp
from jax import lax
from jax.experimental import pallas as pl
from jax.experimental.pallas import tpu as pltpu


def gru_kernel(x_ref, p_ref, out_ref):
    """Runs the whole GRU sequence; final hidden state -> out_ref.

    x_ref:   (bs, seq)    native batch-major input (input_dim == 1 folded away)
    p_ref:   (16, 3H)     packed params:
                            rows 0..H-1 : W_hh^T            (H, 3H)
                            row  H      : W_ih^T             (1, 3H)
                            row  H+1    : b_ih+b_hh (r|z)    lanes [0, 2H)
                            row  H+2    : b_ih (n)           lanes [0, H)
                            row  H+3    : b_hh (n)           lanes [0, H)
                            rows H+4..  : zero padding
    out_ref: (bs, H)      final hidden state
    Gate order along the 3H axis is PyTorch's [r | z | n].
    """
    bs, seq = x_ref.shape
    H = out_ref.shape[-1]
    G = 3 * H

    p = p_ref[...]                                   # (16, 3H)
    whh = p[0:H, :]                                  # (H, 3H)
    wih = p[H:H + 1, :]                              # (1, 3H)
    b_rz = p[H + 1:H + 2, :2 * H]                    # (1, 2H)  (b_ih+b_hh folded)
    b_n_ih = p[H + 2:H + 3, :H]                      # (1, H)
    b_n_hh = p[H + 3:H + 4, :H]                      # (1, H)  stays inside r*(...)

    wih_rz = wih[:, :2 * H]                          # (1, 2H)
    wih_n = wih[:, 2 * H:]                           # (1, H)

    # Precompute the input-gate contributions for every timestep before the
    # recurrence. input_dim == 1 -> a lane-column of x times a weight row.
    # Kept as per-t 2-D slices (no 3-D intermediate -> low vreg pressure).
    x = x_ref[...]                                   # (bs, seq)
    gx_rz = [x[:, t:t + 1] * wih_rz + b_rz for t in range(seq)]   # (bs, 2H) each
    gx_n = [x[:, t:t + 1] * wih_n + b_n_ih for t in range(seq)]   # (bs, H) each

    # Hoist the loop-invariant W_hh row broadcasts (sublane broadcast to bs)
    # out of the unrolled time loop: 8 broadcasts total, not 8*seq.
    whh_rows = [jnp.broadcast_to(whh[k:k + 1, :], (bs, G)) for k in range(H)]

    def hidden_matvec(h):
        # (bs, H) @ (H, 3H) on the VPU: broadcast-MAC over the H=8 contraction
        # elements with a pairwise tree reduction (dependence depth 3, not 7).
        parts = [h[:, k:k + 1] * whh_rows[k] for k in range(H)]
        while len(parts) > 1:
            nxt = [parts[i] + parts[i + 1] for i in range(0, len(parts) - 1, 2)]
            if len(parts) % 2:
                nxt.append(parts[-1])
            parts = nxt
        return parts[0]                              # (bs, 3H)

    # Fully unrolled time loop; h stays vreg-resident across steps.
    h = jnp.zeros((bs, H), jnp.float32)
    for t in range(seq):
        gh = hidden_matvec(h)                        # (bs, 3H)
        # One fused sigmoid over the adjacent r|z lanes (single EUP call).
        rz = jax.nn.sigmoid(gx_rz[t] + gh[:, :2 * H])
        r = rz[:, :H]
        z = rz[:, H:]
        n = jnp.tanh(gx_n[t] + r * (gh[:, 2 * H:] + b_n_hh))
        h = n + z * (h - n)                          # == (1-z)*n + z*h

    out_ref[...] = h


def pack_gru_params(w_ih, w_hh, b_ih, b_hh):
    """One-time (init-time) packing of PyTorch GRU params into a single slab.

    w_ih: (3H, 1), w_hh: (3H, H), b_ih/b_hh: (3H,)  ->  (16, 3H) f32 slab.
    Biases for the r/z gates are folded here (b_ih + b_hh); the n-gate keeps
    b_hh separate because PyTorch applies it inside the r*(...) term.
    """
    H = w_hh.shape[1]
    G = 3 * H
    slab = jnp.zeros((16, G), jnp.float32)
    slab = slab.at[0:H, :].set(jnp.transpose(w_hh).astype(jnp.float32))   # W_hh^T
    slab = slab.at[H, :].set(w_ih[:, 0].astype(jnp.float32))              # W_ih^T
    slab = slab.at[H + 1, :2 * H].set((b_ih[:2 * H] + b_hh[:2 * H]).astype(jnp.float32))
    slab = slab.at[H + 2, :H].set(b_ih[2 * H:].astype(jnp.float32))
    slab = slab.at[H + 3, :H].set(b_hh[2 * H:].astype(jnp.float32))
    return slab


def rnn_encoder_forward(x, packed_params):
    """x: (bs, seq) float32, packed_params: (16, 3H). Returns (bs, H)."""
    bs, _ = x.shape
    H = packed_params.shape[1] // 3

    vmem_spec = pl.BlockSpec(memory_space=pltpu.MemorySpace.VMEM)
    out = pl.pallas_call(
        gru_kernel,
        out_shape=jax.ShapeDtypeStruct((bs, H), jnp.float32),
        in_specs=[vmem_spec, vmem_spec],
        out_specs=vmem_spec,
    )(x, packed_params)
    return out
    # Note: keep grid=() / single TensorCore. Splitting an 8-step serial
    # recurrence with bs=2 across v7x's two TCs adds sync for zero parallel
    # work; only add a batch-parallel grid axis once bs reaches real tile sizes.


def gru_reference(x, w_ih, w_hh, b_ih, b_hh):
    """Pure-JAX reference of nn.GRU final hidden state (gate order r,z,n)."""
    bs, seq = x.shape
    H = w_hh.shape[1]
    h0 = jnp.zeros((bs, H), jnp.float32)

    def step(h, x_t):                       # x_t: (bs,)
        gx = x_t[:, None] * w_ih.T[0][None, :] + b_ih[None, :]
        gh = h @ w_hh.T + b_hh[None, :]
        r = jax.nn.sigmoid(gx[:, 0:H] + gh[:, 0:H])
        z = jax.nn.sigmoid(gx[:, H:2 * H] + gh[:, H:2 * H])
        n = jnp.tanh(gx[:, 2 * H:] + r * gh[:, 2 * H:])
        h_new = (1.0 - z) * n + z * h
        return h_new, None

    h_final, _ = lax.scan(step, h0, jnp.transpose(x))
    return h_final


if __name__ == "__main__":
    BS, SEQ = 2, 8
    INPUT_DIM, HIDDEN = 1, 8

    key = jax.random.PRNGKey(0)
    kx, k1, k2, k3, k4 = jax.random.split(key, 5)

    # Deterministic params, PyTorch-style U(-1/sqrt(H), 1/sqrt(H)) init.
    bound = 1.0 / jnp.sqrt(jnp.float32(HIDDEN))
    w_ih = jax.random.uniform(k1, (3 * HIDDEN, INPUT_DIM), jnp.float32, -bound, bound)
    w_hh = jax.random.uniform(k2, (3 * HIDDEN, HIDDEN), jnp.float32, -bound, bound)
    b_ih = jax.random.uniform(k3, (3 * HIDDEN,), jnp.float32, -bound, bound)
    b_hh = jax.random.uniform(k4, (3 * HIDDEN,), jnp.float32, -bound, bound)

    x = jax.random.normal(kx, (BS, SEQ), jnp.float32)

    # One-time parameter packing (model-init cost, not per-call).
    packed = jax.block_until_ready(pack_gru_params(w_ih, w_hh, b_ih, b_hh))

    out = rnn_encoder_forward(x, packed)
    out = jax.block_until_ready(out)

    ref = gru_reference(x, w_ih, w_hh, b_ih, b_hh)
    assert out.shape == (BS, HIDDEN)
    assert jnp.allclose(out, ref, atol=1e-5, rtol=1e-5)

    print("KERNEL_OK")
</pallas_src>

<mosaic_0001>
module attributes {stable_mosaic.version = 11 : i64} {
  func.func @gru_kernel(%arg0: memref<2x8xf32, #tpu.memory_space<vmem>>, %arg1: memref<16x24xf32, #tpu.memory_space<vmem>>, %arg2: memref<2x8xf32, #tpu.memory_space<vmem>>) attributes {dimension_semantics = [], scalar_prefetch = 0 : i64, scratch_operands = 0 : i64, tpu.core_type = #tpu.core_type<tc>} {
    %c0 = arith.constant 0 : index
    %c0_0 = arith.constant 0 : index
    %0 = vector.load %arg1[%c0, %c0_0] : memref<16x24xf32, #tpu.memory_space<vmem>>, vector<16x24xf32>
    %1 = vector.extract_strided_slice %0 {offsets = [0, 0], sizes = [8, 24], strides = [1, 1]} : vector<16x24xf32> to vector<8x24xf32>
    %2 = vector.extract_strided_slice %0 {offsets = [8, 0], sizes = [1, 24], strides = [1, 1]} : vector<16x24xf32> to vector<1x24xf32>
    %3 = vector.extract_strided_slice %0 {offsets = [9, 0], sizes = [1, 16], strides = [1, 1]} : vector<16x24xf32> to vector<1x16xf32>
    %4 = vector.extract_strided_slice %0 {offsets = [10, 0], sizes = [1, 8], strides = [1, 1]} : vector<16x24xf32> to vector<1x8xf32>
    %5 = vector.extract_strided_slice %0 {offsets = [11, 0], sizes = [1, 8], strides = [1, 1]} : vector<16x24xf32> to vector<1x8xf32>
    %6 = vector.extract_strided_slice %2 {offsets = [0, 0], sizes = [1, 16], strides = [1, 1]} : vector<1x24xf32> to vector<1x16xf32>
    %7 = vector.extract_strided_slice %2 {offsets = [0, 16], sizes = [1, 8], strides = [1, 1]} : vector<1x24xf32> to vector<1x8xf32>
    %c0_1 = arith.constant 0 : index
    %c0_2 = arith.constant 0 : index
    %8 = vector.load %arg0[%c0_1, %c0_2] : memref<2x8xf32, #tpu.memory_space<vmem>>, vector<2x8xf32>
    %9 = vector.extract_strided_slice %8 {offsets = [0, 0], sizes = [2, 1], strides = [1, 1]} : vector<2x8xf32> to vector<2x1xf32>
    %10 = vector.broadcast %9 : vector<2x1xf32> to vector<2x16xf32>
    %11 = vector.broadcast %6 : vector<1x16xf32> to vector<2x16xf32>
    %12 = arith.mulf %10, %11 : vector<2x16xf32>
    %13 = vector.broadcast %3 : vector<1x16xf32> to vector<2x16xf32>
    %14 = arith.addf %12, %13 : vector<2x16xf32>
    %15 = vector.extract_strided_slice %8 {offsets = [0, 1], sizes = [2, 1], strides = [1, 1]} : vector<2x8xf32> to vector<2x1xf32>
    %16 = vector.broadcast %15 : vector<2x1xf32> to vector<2x16xf32>
    %17 = vector.broadcast %6 : vector<1x16xf32> to vector<2x16xf32>
    %18 = arith.mulf %16, %17 : vector<2x16xf32>
    %19 = vector.broadcast %3 : vector<1x16xf32> to vector<2x16xf32>
    %20 = arith.addf %18, %19 : vector<2x16xf32>
    %21 = vector.extract_strided_slice %8 {offsets = [0, 2], sizes = [2, 1], strides = [1, 1]} : vector<2x8xf32> to vector<2x1xf32>
    %22 = vector.broadcast %21 : vector<2x1xf32> to vector<2x16xf32>
    %23 = vector.broadcast %6 : vector<1x16xf32> to vector<2x16xf32>
    %24 = arith.mulf %22, %23 : vector<2x16xf32>
    %25 = vector.broadcast %3 : vector<1x16xf32> to vector<2x16xf32>
    %26 = arith.addf %24, %25 : vector<2x16xf32>
    %27 = vector.extract_strided_slice %8 {offsets = [0, 3], sizes = [2, 1], strides = [1, 1]} : vector<2x8xf32> to vector<2x1xf32>
    %28 = vector.broadcast %27 : vector<2x1xf32> to vector<2x16xf32>
    %29 = vector.broadcast %6 : vector<1x16xf32> to vector<2x16xf32>
    %30 = arith.mulf %28, %29 : vector<2x16xf32>
    %31 = vector.broadcast %3 : vector<1x16xf32> to vector<2x16xf32>
    %32 = arith.addf %30, %31 : vector<2x16xf32>
    %33 = vector.extract_strided_slice %8 {offsets = [0, 4], sizes = [2, 1], strides = [1, 1]} : vector<2x8xf32> to vector<2x1xf32>
    %34 = vector.broadcast %33 : vector<2x1xf32> to vector<2x16xf32>
    %35 = vector.broadcast %6 : vector<1x16xf32> to vector<2x16xf32>
    %36 = arith.mulf %34, %35 : vector<2x16xf32>
    %37 = vector.broadcast %3 : vector<1x16xf32> to vector<2x16xf32>
    %38 = arith.addf %36, %37 : vector<2x16xf32>
    %39 = vector.extract_strided_slice %8 {offsets = [0, 5], sizes = [2, 1], strides = [1, 1]} : vector<2x8xf32> to vector<2x1xf32>
    %40 = vector.broadcast %39 : vector<2x1xf32> to vector<2x16xf32>
    %41 = vector.broadcast %6 : vector<1x16xf32> to vector<2x16xf32>
    %42 = arith.mulf %40, %41 : vector<2x16xf32>
    %43 = vector.broadcast %3 : vector<1x16xf32> to vector<2x16xf32>
    %44 = arith.addf %42, %43 : vector<2x16xf32>
    %45 = vector.extract_strided_slice %8 {offsets = [0, 6], sizes = [2, 1], strides = [1, 1]} : vector<2x8xf32> to vector<2x1xf32>
    %46 = vector.broadcast %45 : vector<2x1xf32> to vector<2x16xf32>
    %47 = vector.broadcast %6 : vector<1x16xf32> to vector<2x16xf32>
    %48 = arith.mulf %46, %47 : vector<2x16xf32>
    %49 = vector.broadcast %3 : vector<1x16xf32> to vector<2x16xf32>
    %50 = arith.addf %48, %49 : vector<2x16xf32>
    %51 = vector.extract_strided_slice %8 {offsets = [0, 7], sizes = [2, 1], strides = [1, 1]} : vector<2x8xf32> to vector<2x1xf32>
    %52 = vector.broadcast %51 : vector<2x1xf32> to vector<2x16xf32>
    %53 = vector.broadcast %6 : vector<1x16xf32> to vector<2x16xf32>
    %54 = arith.mulf %52, %53 : vector<2x16xf32>
    %55 = vector.broadcast %3 : vector<1x16xf32> to vector<2x16xf32>
    %56 = arith.addf %54, %55 : vector<2x16xf32>
    %57 = vector.extract_strided_slice %8 {offsets = [0, 0], sizes = [2, 1], strides = [1, 1]} : vector<2x8xf32> to vector<2x1xf32>
    %58 = vector.broadcast %57 : vector<2x1xf32> to vector<2x8xf32>
    %59 = vector.broadcast %7 : vector<1x8xf32> to vector<2x8xf32>
    %60 = arith.mulf %58, %59 : vector<2x8xf32>
    %61 = vector.broadcast %4 : vector<1x8xf32> to vector<2x8xf32>
    %62 = arith.addf %60, %61 : vector<2x8xf32>
    %63 = vector.extract_strided_slice %8 {offsets = [0, 1], sizes = [2, 1], strides = [1, 1]} : vector<2x8xf32> to vector<2x1xf32>
    %64 = vector.broadcast %63 : vector<2x1xf32> to vector<2x8xf32>
    %65 = vector.broadcast %7 : vector<1x8xf32> to vector<2x8xf32>
    %66 = arith.mulf %64, %65 : vector<2x8xf32>
    %67 = vector.broadcast %4 : vector<1x8xf32> to vector<2x8xf32>
    %68 = arith.addf %66, %67 : vector<2x8xf32>
    %69 = vector.extract_strided_slice %8 {offsets = [0, 2], sizes = [2, 1], strides = [1, 1]} : vector<2x8xf32> to vector<2x1xf32>
    %70 = vector.broadcast %69 : vector<2x1xf32> to vector<2x8xf32>
    %71 = vector.broadcast %7 : vector<1x8xf32> to vector<2x8xf32>
    %72 = arith.mulf %70, %71 : vector<2x8xf32>
    %73 = vector.broadcast %4 : vector<1x8xf32> to vector<2x8xf32>
    %74 = arith.addf %72, %73 : vector<2x8xf32>
    %75 = vector.extract_strided_slice %8 {offsets = [0, 3], sizes = [2, 1], strides = [1, 1]} : vector<2x8xf32> to vector<2x1xf32>
    %76 = vector.broadcast %75 : vector<2x1xf32> to vector<2x8xf32>
    %77 = vector.broadcast %7 : vector<1x8xf32> to vector<2x8xf32>
    %78 = arith.mulf %76, %77 : vector<2x8xf32>
    %79 = vector.broadcast %4 : vector<1x8xf32> to vector<2x8xf32>
    %80 = arith.addf %78, %79 : vector<2x8xf32>
    %81 = vector.extract_strided_slice %8 {offsets = [0, 4], sizes = [2, 1], strides = [1, 1]} : vector<2x8xf32> to vector<2x1xf32>
    %82 = vector.broadcast %81 : vector<2x1xf32> to vector<2x8xf32>
    %83 = vector.broadcast %7 : vector<1x8xf32> to vector<2x8xf32>
    %84 = arith.mulf %82, %83 : vector<2x8xf32>
    %85 = vector.broadcast %4 : vector<1x8xf32> to vector<2x8xf32>
    %86 = arith.addf %84, %85 : vector<2x8xf32>
    %87 = vector.extract_strided_slice %8 {offsets = [0, 5], sizes = [2, 1], strides = [1, 1]} : vector<2x8xf32> to vector<2x1xf32>
    %88 = vector.broadcast %87 : vector<2x1xf32> to vector<2x8xf32>
    %89 = vector.broadcast %7 : vector<1x8xf32> to vector<2x8xf32>
    %90 = arith.mulf %88, %89 : vector<2x8xf32>
    %91 = vector.broadcast %4 : vector<1x8xf32> to vector<2x8xf32>
    %92 = arith.addf %90, %91 : vector<2x8xf32>
    %93 = vector.extract_strided_slice %8 {offsets = [0, 6], sizes = [2, 1], strides = [1, 1]} : vector<2x8xf32> to vector<2x1xf32>
    %94 = vector.broadcast %93 : vector<2x1xf32> to vector<2x8xf32>
    %95 = vector.broadcast %7 : vector<1x8xf32> to vector<2x8xf32>
    %96 = arith.mulf %94, %95 : vector<2x8xf32>
    %97 = vector.broadcast %4 : vector<1x8xf32> to vector<2x8xf32>
    %98 = arith.addf %96, %97 : vector<2x8xf32>
    %99 = vector.extract_strided_slice %8 {offsets = [0, 7], sizes = [2, 1], strides = [1, 1]} : vector<2x8xf32> to vector<2x1xf32>
    %100 = vector.broadcast %99 : vector<2x1xf32> to vector<2x8xf32>
    %101 = vector.broadcast %7 : vector<1x8xf32> to vector<2x8xf32>
    %102 = arith.mulf %100, %101 : vector<2x8xf32>
    %103 = vector.broadcast %4 : vector<1x8xf32> to vector<2x8xf32>
    %104 = arith.addf %102, %103 : vector<2x8xf32>
    %105 = vector.extract_strided_slice %1 {offsets = [0, 0], sizes = [1, 24], strides = [1, 1]} : vector<8x24xf32> to vector<1x24xf32>
    %106 = vector.shape_cast %105 : vector<1x24xf32> to vector<1x24xf32>
    %107 = vector.broadcast %106 : vector<1x24xf32> to vector<2x24xf32>
    %108 = vector.extract_strided_slice %1 {offsets = [1, 0], sizes = [1, 24], strides = [1, 1]} : vector<8x24xf32> to vector<1x24xf32>
    %109 = vector.shape_cast %108 : vector<1x24xf32> to vector<1x24xf32>
    %110 = vector.broadcast %109 : vector<1x24xf32> to vector<2x24xf32>
    %111 = vector.extract_strided_slice %1 {offsets = [2, 0], sizes = [1, 24], strides = [1, 1]} : vector<8x24xf32> to vector<1x24xf32>
    %112 = vector.shape_cast %111 : vector<1x24xf32> to vector<1x24xf32>
    %113 = vector.broadcast %112 : vector<1x24xf32> to vector<2x24xf32>
    %114 = vector.extract_strided_slice %1 {offsets = [3, 0], sizes = [1, 24], strides = [1, 1]} : vector<8x24xf32> to vector<1x24xf32>
    %115 = vector.shape_cast %114 : vector<1x24xf32> to vector<1x24xf32>
    %116 = vector.broadcast %115 : vector<1x24xf32> to vector<2x24xf32>
    %117 = vector.extract_strided_slice %1 {offsets = [4, 0], sizes = [1, 24], strides = [1, 1]} : vector<8x24xf32> to vector<1x24xf32>
    %118 = vector.shape_cast %117 : vector<1x24xf32> to vector<1x24xf32>
    %119 = vector.broadcast %118 : vector<1x24xf32> to vector<2x24xf32>
    %120 = vector.extract_strided_slice %1 {offsets = [5, 0], sizes = [1, 24], strides = [1, 1]} : vector<8x24xf32> to vector<1x24xf32>
    %121 = vector.shape_cast %120 : vector<1x24xf32> to vector<1x24xf32>
    %122 = vector.broadcast %121 : vector<1x24xf32> to vector<2x24xf32>
    %123 = vector.extract_strided_slice %1 {offsets = [6, 0], sizes = [1, 24], strides = [1, 1]} : vector<8x24xf32> to vector<1x24xf32>
    %124 = vector.shape_cast %123 : vector<1x24xf32> to vector<1x24xf32>
    %125 = vector.broadcast %124 : vector<1x24xf32> to vector<2x24xf32>
    %126 = vector.extract_strided_slice %1 {offsets = [7, 0], sizes = [1, 24], strides = [1, 1]} : vector<8x24xf32> to vector<1x24xf32>
    %127 = vector.shape_cast %126 : vector<1x24xf32> to vector<1x24xf32>
    %128 = vector.broadcast %127 : vector<1x24xf32> to vector<2x24xf32>
    %cst = arith.constant 0.000000e+00 : f32
    %129 = vector.broadcast %cst : f32 to vector<2x8xf32>
    %130 = vector.extract_strided_slice %129 {offsets = [0, 0], sizes = [2, 1], strides = [1, 1]} : vector<2x8xf32> to vector<2x1xf32>
    %131 = vector.broadcast %130 : vector<2x1xf32> to vector<2x24xf32>
    %132 = arith.mulf %131, %107 : vector<2x24xf32>
    %133 = vector.extract_strided_slice %129 {offsets = [0, 1], sizes = [2, 1], strides = [1, 1]} : vector<2x8xf32> to vector<2x1xf32>
    %134 = vector.broadcast %133 : vector<2x1xf32> to vector<2x24xf32>
    %135 = arith.mulf %134, %110 : vector<2x24xf32>
    %136 = vector.extract_strided_slice %129 {offsets = [0, 2], sizes = [2, 1], strides = [1, 1]} : vector<2x8xf32> to vector<2x1xf32>
    %137 = vector.broadcast %136 : vector<2x1xf32> to vector<2x24xf32>
    %138 = arith.mulf %137, %113 : vector<2x24xf32>
    %139 = vector.extract_strided_slice %129 {offsets = [0, 3], sizes = [2, 1], strides = [1, 1]} : vector<2x8xf32> to vector<2x1xf32>
    %140 = vector.broadcast %139 : vector<2x1xf32> to vector<2x24xf32>
    %141 = arith.mulf %140, %116 : vector<2x24xf32>
    %142 = vector.extract_strided_slice %129 {offsets = [0, 4], sizes = [2, 1], strides = [1, 1]} : vector<2x8xf32> to vector<2x1xf32>
    %143 = vector.broadcast %142 : vector<2x1xf32> to vector<2x24xf32>
    %144 = arith.mulf %143, %119 : vector<2x24xf32>
    %145 = vector.extract_strided_slice %129 {offsets = [0, 5], sizes = [2, 1], strides = [1, 1]} : vector<2x8xf32> to vector<2x1xf32>
    %146 = vector.broadcast %145 : vector<2x1xf32> to vector<2x24xf32>
    %147 = arith.mulf %146, %122 : vector<2x24xf32>
    %148 = vector.extract_strided_slice %129 {offsets = [0, 6], sizes = [2, 1], strides = [1, 1]} : vector<2x8xf32> to vector<2x1xf32>
    %149 = vector.broadcast %148 : vector<2x1xf32> to vector<2x24xf32>
    %150 = arith.mulf %149, %125 : vector<2x24xf32>
    %151 = vector.extract_strided_slice %129 {offsets = [0, 7], sizes = [2, 1], strides = [1, 1]} : vector<2x8xf32> to vector<2x1xf32>
    %152 = vector.broadcast %151 : vector<2x1xf32> to vector<2x24xf32>
    %153 = arith.mulf %152, %128 : vector<2x24xf32>
    %154 = arith.addf %132, %135 : vector<2x24xf32>
    %155 = arith.addf %138, %141 : vector<2x24xf32>
    %156 = arith.addf %144, %147 : vector<2x24xf32>
    %157 = arith.addf %150, %153 : vector<2x24xf32>
    %158 = arith.addf %154, %155 : vector<2x24xf32>
    %159 = arith.addf %156, %157 : vector<2x24xf32>
    %160 = arith.addf %158, %159 : vector<2x24xf32>
    %161 = vector.extract_strided_slice %160 {offsets = [0, 0], sizes = [2, 16], strides = [1, 1]} : vector<2x24xf32> to vector<2x16xf32>
    %162 = arith.addf %14, %161 : vector<2x16xf32>
    %163 = arith.negf %162 : vector<2x16xf32>
    %164 = math.exp %163 : vector<2x16xf32>
    %cst_3 = arith.constant 1.000000e+00 : f32
    %165 = vector.broadcast %cst_3 : f32 to vector<2x16xf32>
    %166 = arith.addf %165, %164 : vector<2x16xf32>
    %167 = arith.divf %165, %166 : vector<2x16xf32>
    %168 = vector.extract_strided_slice %167 {offsets = [0, 0], sizes = [2, 8], strides = [1, 1]} : vector<2x16xf32> to vector<2x8xf32>
    %169 = vector.extract_strided_slice %167 {offsets = [0, 8], sizes = [2, 8], strides = [1, 1]} : vector<2x16xf32> to vector<2x8xf32>
    %170 = vector.extract_strided_slice %160 {offsets = [0, 16], sizes = [2, 8], strides = [1, 1]} : vector<2x24xf32> to vector<2x8xf32>
    %171 = vector.broadcast %5 : vector<1x8xf32> to vector<2x8xf32>
    %172 = arith.addf %170, %171 : vector<2x8xf32>
    %173 = arith.mulf %168, %172 : vector<2x8xf32>
    %174 = arith.addf %62, %173 : vector<2x8xf32>
    %175 = math.tanh %174 : vector<2x8xf32>
    %176 = arith.subf %129, %175 : vector<2x8xf32>
    %177 = arith.mulf %169, %176 : vector<2x8xf32>
    %178 = arith.addf %175, %177 : vector<2x8xf32>
    %179 = vector.extract_strided_slice %178 {offsets = [0, 0], sizes = [2, 1], strides = [1, 1]} : vector<2x8xf32> to vector<2x1xf32>
    %180 = vector.broadcast %179 : vector<2x1xf32> to vector<2x24xf32>
    %181 = arith.mulf %180, %107 : vector<2x24xf32>
    %182 = vector.extract_strided_slice %178 {offsets = [0, 1], sizes = [2, 1], strides = [1, 1]} : vector<2x8xf32> to vector<2x1xf32>
    %183 = vector.broadcast %182 : vector<2x1xf32> to vector<2x24xf32>
    %184 = arith.mulf %183, %110 : vector<2x24xf32>
    %185 = vector.extract_strided_slice %178 {offsets = [0, 2], sizes = [2, 1], strides = [1, 1]} : vector<2x8xf32> to vector<2x1xf32>
    %186 = vector.broadcast %185 : vector<2x1xf32> to vector<2x24xf32>
    %187 = arith.mulf %186, %113 : vector<2x24xf32>
    %188 = vector.extract_strided_slice %178 {offsets = [0, 3], sizes = [2, 1], strides = [1, 1]} : vector<2x8xf32> to vector<2x1xf32>
    %189 = vector.broadcast %188 : vector<2x1xf32> to vector<2x24xf32>
    %190 = arith.mulf %189, %116 : vector<2x24xf32>
    %191 = vector.extract_strided_slice %178 {offsets = [0, 4], sizes = [2, 1], strides = [1, 1]} : vector<2x8xf32> to vector<2x1xf32>
    %192 = vector.broadcast %191 : vector<2x1xf32> to vector<2x24xf32>
    %193 = arith.mulf %192, %119 : vector<2x24xf32>
    %194 = vector.extract_strided_slice %178 {offsets = [0, 5], sizes = [2, 1], strides = [1, 1]} : vector<2x8xf32> to vector<2x1xf32>
    %195 = vector.broadcast %194 : vector<2x1xf32> to vector<2x24xf32>
    %196 = arith.mulf %195, %122 : vector<2x24xf32>
    %197 = vector.extract_strided_slice %178 {offsets = [0, 6], sizes = [2, 1], strides = [1, 1]} : vector<2x8xf32> to vector<2x1xf32>
    %198 = vector.broadcast %197 : vector<2x1xf32> to vector<2x24xf32>
    %199 = arith.mulf %198, %125 : vector<2x24xf32>
    %200 = vector.extract_strided_slice %178 {offsets = [0, 7], sizes = [2, 1], strides = [1, 1]} : vector<2x8xf32> to vector<2x1xf32>
    %201 = vector.broadcast %200 : vector<2x1xf32> to vector<2x24xf32>
    %202 = arith.mulf %201, %128 : vector<2x24xf32>
    %203 = arith.addf %181, %184 : vector<2x24xf32>
    %204 = arith.addf %187, %190 : vector<2x24xf32>
    %205 = arith.addf %193, %196 : vector<2x24xf32>
    %206 = arith.addf %199, %202 : vector<2x24xf32>
    %207 = arith.addf %203, %204 : vector<2x24xf32>
    %208 = arith.addf %205, %206 : vector<2x24xf32>
    %209 = arith.addf %207, %208 : vector<2x24xf32>
    %210 = vector.extract_strided_slice %209 {offsets = [0, 0], sizes = [2, 16], strides = [1, 1]} : vector<2x24xf32> to vector<2x16xf32>
    %211 = arith.addf %20, %210 : vector<2x16xf32>
    %212 = arith.negf %211 : vector<2x16xf32>
    %213 = math.exp %212 : vector<2x16xf32>
    %cst_4 = arith.constant 1.000000e+00 : f32
    %214 = vector.broadcast %cst_4 : f32 to vector<2x16xf32>
    %215 = arith.addf %214, %213 : vector<2x16xf32>
    %216 = arith.divf %214, %215 : vector<2x16xf32>
    %217 = vector.extract_strided_slice %216 {offsets = [0, 0], sizes = [2, 8], strides = [1, 1]} : vector<2x16xf32> to vector<2x8xf32>
    %218 = vector.extract_strided_slice %216 {offsets = [0, 8], sizes = [2, 8], strides = [1, 1]} : vector<2x16xf32> to vector<2x8xf32>
    %219 = vector.extract_strided_slice %209 {offsets = [0, 16], sizes = [2, 8], strides = [1, 1]} : vector<2x24xf32> to vector<2x8xf32>
    %220 = vector.broadcast %5 : vector<1x8xf32> to vector<2x8xf32>
    %221 = arith.addf %219, %220 : vector<2x8xf32>
    %222 = arith.mulf %217, %221 : vector<2x8xf32>
    %223 = arith.addf %68, %222 : vector<2x8xf32>
    %224 = math.tanh %223 : vector<2x8xf32>
    %225 = arith.subf %178, %224 : vector<2x8xf32>
    %226 = arith.mulf %218, %225 : vector<2x8xf32>
    %227 = arith.addf %224, %226 : vector<2x8xf32>
    %228 = vector.extract_strided_slice %227 {offsets = [0, 0], sizes = [2, 1], strides = [1, 1]} : vector<2x8xf32> to vector<2x1xf32>
    %229 = vector.broadcast %228 : vector<2x1xf32> to vector<2x24xf32>
    %230 = arith.mulf %229, %107 : vector<2x24xf32>
    %231 = vector.extract_strided_slice %227 {offsets = [0, 1], sizes = [2, 1], strides = [1, 1]} : vector<2x8xf32> to vector<2x1xf32>
    %232 = vector.broadcast %231 : vector<2x1xf32> to vector<2x24xf32>
    %233 = arith.mulf %232, %110 : vector<2x24xf32>
    %234 = vector.extract_strided_slice %227 {offsets = [0, 2], sizes = [2, 1], strides = [1, 1]} : vector<2x8xf32> to vector<2x1xf32>
    %235 = vector.broadcast %234 : vector<2x1xf32> to vector<2x24xf32>
    %236 = arith.mulf %235, %113 : vector<2x24xf32>
    %237 = vector.extract_strided_slice %227 {offsets = [0, 3], sizes = [2, 1], strides = [1, 1]} : vector<2x8xf32> to vector<2x1xf32>
    %238 = vector.broadcast %237 : vector<2x1xf32> to vector<2x24xf32>
    %239 = arith.mulf %238, %116 : vector<2x24xf32>
    %240 = vector.extract_strided_slice %227 {offsets = [0, 4], sizes = [2, 1], strides = [1, 1]} : vector<2x8xf32> to vector<2x1xf32>
    %241 = vector.broadcast %240 : vector<2x1xf32> to vector<2x24xf32>
    %242 = arith.mulf %241, %119 : vector<2x24xf32>
    %243 = vector.extract_strided_slice %227 {offsets = [0, 5], sizes = [2, 1], strides = [1, 1]} : vector<2x8xf32> to vector<2x1xf32>
    %244 = vector.broadcast %243 : vector<2x1xf32> to vector<2x24xf32>
    %245 = arith.mulf %244, %122 : vector<2x24xf32>
    %246 = vector.extract_strided_slice %227 {offsets = [0, 6], sizes = [2, 1], strides = [1, 1]} : vector<2x8xf32> to vector<2x1xf32>
    %247 = vector.broadcast %246 : vector<2x1xf32> to vector<2x24xf32>
    %248 = arith.mulf %247, %125 : vector<2x24xf32>
    %249 = vector.extract_strided_slice %227 {offsets = [0, 7], sizes = [2, 1], strides = [1, 1]} : vector<2x8xf32> to vector<2x1xf32>
    %250 = vector.broadcast %249 : vector<2x1xf32> to vector<2x24xf32>
    %251 = arith.mulf %250, %128 : vector<2x24xf32>
    %252 = arith.addf %230, %233 : vector<2x24xf32>
    %253 = arith.addf %236, %239 : vector<2x24xf32>
    %254 = arith.addf %242, %245 : vector<2x24xf32>
    %255 = arith.addf %248, %251 : vector<2x24xf32>
    %256 = arith.addf %252, %253 : vector<2x24xf32>
    %257 = arith.addf %254, %255 : vector<2x24xf32>
    %258 = arith.addf %256, %257 : vector<2x24xf32>
    %259 = vector.extract_strided_slice %258 {offsets = [0, 0], sizes = [2, 16], strides = [1, 1]} : vector<2x24xf32> to vector<2x16xf32>
    %260 = arith.addf %26, %259 : vector<2x16xf32>
    %261 = arith.negf %260 : vector<2x16xf32>
    %262 = math.exp %261 : vector<2x16xf32>
    %cst_5 = arith.constant 1.000000e+00 : f32
    %263 = vector.broadcast %cst_5 : f32 to vector<2x16xf32>
    %264 = arith.addf %263, %262 : vector<2x16xf32>
    %265 = arith.divf %263, %264 : vector<2x16xf32>
    %266 = vector.extract_strided_slice %265 {offsets = [0, 0], sizes = [2, 8], strides = [1, 1]} : vector<2x16xf32> to vector<2x8xf32>
    %267 = vector.extract_strided_slice %265 {offsets = [0, 8], sizes = [2, 8], strides = [1, 1]} : vector<2x16xf32> to vector<2x8xf32>
    %268 = vector.extract_strided_slice %258 {offsets = [0, 16], sizes = [2, 8], strides = [1, 1]} : vector<2x24xf32> to vector<2x8xf32>
    %269 = vector.broadcast %5 : vector<1x8xf32> to vector<2x8xf32>
    %270 = arith.addf %268, %269 : vector<2x8xf32>
    %271 = arith.mulf %266, %270 : vector<2x8xf32>
    %272 = arith.addf %74, %271 : vector<2x8xf32>
    %273 = math.tanh %272 : vector<2x8xf32>
    %274 = arith.subf %227, %273 : vector<2x8xf32>
    %275 = arith.mulf %267, %274 : vector<2x8xf32>
    %276 = arith.addf %273, %275 : vector<2x8xf32>
    %277 = vector.extract_strided_slice %276 {offsets = [0, 0], sizes = [2, 1], strides = [1, 1]} : vector<2x8xf32> to vector<2x1xf32>
    %278 = vector.broadcast %277 : vector<2x1xf32> to vector<2x24xf32>
    %279 = arith.mulf %278, %107 : vector<2x24xf32>
    %280 = vector.extract_strided_slice %276 {offsets = [0, 1], sizes = [2, 1], strides = [1, 1]} : vector<2x8xf32> to vector<2x1xf32>
    %281 = vector.broadcast %280 : vector<2x1xf32> to vector<2x24xf32>
    %282 = arith.mulf %281, %110 : vector<2x24xf32>
    %283 = vector.extract_strided_slice %276 {offsets = [0, 2], sizes = [2, 1], strides = [1, 1]} : vector<2x8xf32> to vector<2x1xf32>
    %284 = vector.broadcast %283 : vector<2x1xf32> to vector<2x24xf32>
    %285 = arith.mulf %284, %113 : vector<2x24xf32>
    %286 = vector.extract_strided_slice %276 {offsets = [0, 3], sizes = [2, 1], strides = [1, 1]} : vector<2x8xf32> to vector<2x1xf32>
    %287 = vector.broadcast %286 : vector<2x1xf32> to vector<2x24xf32>
    %288 = arith.mulf %287, %116 : vector<2x24xf32>
    %289 = vector.extract_strided_slice %276 {offsets = [0, 4], sizes = [2, 1], strides = [1, 1]} : vector<2x8xf32> to vector<2x1xf32>
    %290 = vector.broadcast %289 : vector<2x1xf32> to vector<2x24xf32>
    %291 = arith.mulf %290, %119 : vector<2x24xf32>
    %292 = vector.extract_strided_slice %276 {offsets = [0, 5], sizes = [2, 1], strides = [1, 1]} : vector<2x8xf32> to vector<2x1xf32>
    %293 = vector.broadcast %292 : vector<2x1xf32> to vector<2x24xf32>
    %294 = arith.mulf %293, %122 : vector<2x24xf32>
    %295 = vector.extract_strided_slice %276 {offsets = [0, 6], sizes = [2, 1], strides = [1, 1]} : vector<2x8xf32> to vector<2x1xf32>
    %296 = vector.broadcast %295 : vector<2x1xf32> to vector<2x24xf32>
    %297 = arith.mulf %296, %125 : vector<2x24xf32>
    %298 = vector.extract_strided_slice %276 {offsets = [0, 7], sizes = [2, 1], strides = [1, 1]} : vector<2x8xf32> to vector<2x1xf32>
    %299 = vector.broadcast %298 : vector<2x1xf32> to vector<2x24xf32>
    %300 = arith.mulf %299, %128 : vector<2x24xf32>
    %301 = arith.addf %279, %282 : vector<2x24xf32>
    %302 = arith.addf %285, %288 : vector<2x24xf32>
    %303 = arith.addf %291, %294 : vector<2x24xf32>
    %304 = arith.addf %297, %300 : vector<2x24xf32>
    %305 = arith.addf %301, %302 : vector<2x24xf32>
    %306 = arith.addf %303, %304 : vector<2x24xf32>
    %307 = arith.addf %305, %306 : vector<2x24xf32>
    %308 = vector.extract_strided_slice %307 {offsets = [0, 0], sizes = [2, 16], strides = [1, 1]} : vector<2x24xf32> to vector<2x16xf32>
    %309 = arith.addf %32, %308 : vector<2x16xf32>
    %310 = arith.negf %309 : vector<2x16xf32>
    %311 = math.exp %310 : vector<2x16xf32>
    %cst_6 = arith.constant 1.000000e+00 : f32
    %312 = vector.broadcast %cst_6 : f32 to vector<2x16xf32>
    %313 = arith.addf %312, %311 : vector<2x16xf32>
    %314 = arith.divf %312, %313 : vector<2x16xf32>
    %315 = vector.extract_strided_slice %314 {offsets = [0, 0], sizes = [2, 8], strides = [1, 1]} : vector<2x16xf32> to vector<2x8xf32>
    %316 = vector.extract_strided_slice %314 {offsets = [0, 8], sizes = [2, 8], strides = [1, 1]} : vector<2x16xf32> to vector<2x8xf32>
    %317 = vector.extract_strided_slice %307 {offsets = [0, 16], sizes = [2, 8], strides = [1, 1]} : vector<2x24xf32> to vector<2x8xf32>
    %318 = vector.broadcast %5 : vector<1x8xf32> to vector<2x8xf32>
    %319 = arith.addf %317, %318 : vector<2x8xf32>
    %320 = arith.mulf %315, %319 : vector<2x8xf32>
    %321 = arith.addf %80, %320 : vector<2x8xf32>
    %322 = math.tanh %321 : vector<2x8xf32>
    %323 = arith.subf %276, %322 : vector<2x8xf32>
    %324 = arith.mulf %316, %323 : vector<2x8xf32>
    %325 = arith.addf %322, %324 : vector<2x8xf32>
    %326 = vector.extract_strided_slice %325 {offsets = [0, 0], sizes = [2, 1], strides = [1, 1]} : vector<2x8xf32> to vector<2x1xf32>
    %327 = vector.broadcast %326 : vector<2x1xf32> to vector<2x24xf32>
    %328 = arith.mulf %327, %107 : vector<2x24xf32>
    %329 = vector.extract_strided_slice %325 {offsets = [0, 1], sizes = [2, 1], strides = [1, 1]} : vector<2x8xf32> to vector<2x1xf32>
    %330 = vector.broadcast %329 : vector<2x1xf32> to vector<2x24xf32>
    %331 = arith.mulf %330, %110 : vector<2x24xf32>
    %332 = vector.extract_strided_slice %325 {offsets = [0, 2], sizes = [2, 1], strides = [1, 1]} : vector<2x8xf32> to vector<2x1xf32>
    %333 = vector.broadcast %332 : vector<2x1xf32> to vector<2x24xf32>
    %334 = arith.mulf %333, %113 : vector<2x24xf32>
    %335 = vector.extract_strided_slice %325 {offsets = [0, 3], sizes = [2, 1], strides = [1, 1]} : vector<2x8xf32> to vector<2x1xf32>
    %336 = vector.broadcast %335 : vector<2x1xf32> to vector<2x24xf32>
    %337 = arith.mulf %336, %116 : vector<2x24xf32>
    %338 = vector.extract_strided_slice %325 {offsets = [0, 4], sizes = [2, 1], strides = [1, 1]} : vector<2x8xf32> to vector<2x1xf32>
    %339 = vector.broadcast %338 : vector<2x1xf32> to vector<2x24xf32>
    %340 = arith.mulf %339, %119 : vector<2x24xf32>
    %341 = vector.extract_strided_slice %325 {offsets = [0, 5], sizes = [2, 1], strides = [1, 1]} : vector<2x8xf32> to vector<2x1xf32>
    %342 = vector.broadcast %341 : vector<2x1xf32> to vector<2x24xf32>
    %343 = arith.mulf %342, %122 : vector<2x24xf32>
    %344 = vector.extract_strided_slice %325 {offsets = [0, 6], sizes = [2, 1], strides = [1, 1]} : vector<2x8xf32> to vector<2x1xf32>
    %345 = vector.broadcast %344 : vector<2x1xf32> to vector<2x24xf32>
    %346 = arith.mulf %345, %125 : vector<2x24xf32>
    %347 = vector.extract_strided_slice %325 {offsets = [0, 7], sizes = [2, 1], strides = [1, 1]} : vector<2x8xf32> to vector<2x1xf32>
    %348 = vector.broadcast %347 : vector<2x1xf32> to vector<2x24xf32>
    %349 = arith.mulf %348, %128 : vector<2x24xf32>
    %350 = arith.addf %328, %331 : vector<2x24xf32>
    %351 = arith.addf %334, %337 : vector<2x24xf32>
    %352 = arith.addf %340, %343 : vector<2x24xf32>
    %353 = arith.addf %346, %349 : vector<2x24xf32>
    %354 = arith.addf %350, %351 : vector<2x24xf32>
    %355 = arith.addf %352, %353 : vector<2x24xf32>
    %356 = arith.addf %354, %355 : vector<2x24xf32>
    %357 = vector.extract_strided_slice %356 {offsets = [0, 0], sizes = [2, 16], strides = [1, 1]} : vector<2x24xf32> to vector<2x16xf32>
    %358 = arith.addf %38, %357 : vector<2x16xf32>
    %359 = arith.negf %358 : vector<2x16xf32>
    %360 = math.exp %359 : vector<2x16xf32>
    %cst_7 = arith.constant 1.000000e+00 : f32
    %361 = vector.broadcast %cst_7 : f32 to vector<2x16xf32>
    %362 = arith.addf %361, %360 : vector<2x16xf32>
    %363 = arith.divf %361, %362 : vector<2x16xf32>
    %364 = vector.extract_strided_slice %363 {offsets = [0, 0], sizes = [2, 8], strides = [1, 1]} : vector<2x16xf32> to vector<2x8xf32>
    %365 = vector.extract_strided_slice %363 {offsets = [0, 8], sizes = [2, 8], strides = [1, 1]} : vector<2x16xf32> to vector<2x8xf32>
    %366 = vector.extract_strided_slice %356 {offsets = [0, 16], sizes = [2, 8], strides = [1, 1]} : vector<2x24xf32> to vector<2x8xf32>
    %367 = vector.broadcast %5 : vector<1x8xf32> to vector<2x8xf32>
    %368 = arith.addf %366, %367 : vector<2x8xf32>
    %369 = arith.mulf %364, %368 : vector<2x8xf32>
    %370 = arith.addf %86, %369 : vector<2x8xf32>
    %371 = math.tanh %370 : vector<2x8xf32>
    %372 = arith.subf %325, %371 : vector<2x8xf32>
    %373 = arith.mulf %365, %372 : vector<2x8xf32>
    %374 = arith.addf %371, %373 : vector<2x8xf32>
    %375 = vector.extract_strided_slice %374 {offsets = [0, 0], sizes = [2, 1], strides = [1, 1]} : vector<2x8xf32> to vector<2x1xf32>
    %376 = vector.broadcast %375 : vector<2x1xf32> to vector<2x24xf32>
    %377 = arith.mulf %376, %107 : vector<2x24xf32>
    %378 = vector.extract_strided_slice %374 {offsets = [0, 1], sizes = [2, 1], strides = [1, 1]} : vector<2x8xf32> to vector<2x1xf32>
    %379 = vector.broadcast %378 : vector<2x1xf32> to vector<2x24xf32>
    %380 = arith.mulf %379, %110 : vector<2x24xf32>
    %381 = vector.extract_strided_slice %374 {offsets = [0, 2], sizes = [2, 1], strides = [1, 1]} : vector<2x8xf32> to vector<2x1xf32>
    %382 = vector.broadcast %381 : vector<2x1xf32> to vector<2x24xf32>
    %383 = arith.mulf %382, %113 : vector<2x24xf32>
    %384 = vector.extract_strided_slice %374 {offsets = [0, 3], sizes = [2, 1], strides = [1, 1]} : vector<2x8xf32> to vector<2x1xf32>
    %385 = vector.broadcast %384 : vector<2x1xf32> to vector<2x24xf32>
    %386 = arith.mulf %385, %116 : vector<2x24xf32>
    %387 = vector.extract_strided_slice %374 {offsets = [0, 4], sizes = [2, 1], strides = [1, 1]} : vector<2x8xf32> to vector<2x1xf32>
    %388 = vector.broadcast %387 : vector<2x1xf32> to vector<2x24xf32>
    %389 = arith.mulf %388, %119 : vector<2x24xf32>
    %390 = vector.extract_strided_slice %374 {offsets = [0, 5], sizes = [2, 1], strides = [1, 1]} : vector<2x8xf32> to vector<2x1xf32>
    %391 = vector.broadcast %390 : vector<2x1xf32> to vector<2x24xf32>
    %392 = arith.mulf %391, %122 : vector<2x24xf32>
    %393 = vector.extract_strided_slice %374 {offsets = [0, 6], sizes = [2, 1], strides = [1, 1]} : vector<2x8xf32> to vector<2x1xf32>
    %394 = vector.broadcast %393 : vector<2x1xf32> to vector<2x24xf32>
    %395 = arith.mulf %394, %125 : vector<2x24xf32>
    %396 = vector.extract_strided_slice %374 {offsets = [0, 7], sizes = [2, 1], strides = [1, 1]} : vector<2x8xf32> to vector<2x1xf32>
    %397 = vector.broadcast %396 : vector<2x1xf32> to vector<2x24xf32>
    %398 = arith.mulf %397, %128 : vector<2x24xf32>
    %399 = arith.addf %377, %380 : vector<2x24xf32>
    %400 = arith.addf %383, %386 : vector<2x24xf32>
    %401 = arith.addf %389, %392 : vector<2x24xf32>
    %402 = arith.addf %395, %398 : vector<2x24xf32>
    %403 = arith.addf %399, %400 : vector<2x24xf32>
    %404 = arith.addf %401, %402 : vector<2x24xf32>
    %405 = arith.addf %403, %404 : vector<2x24xf32>
    %406 = vector.extract_strided_slice %405 {offsets = [0, 0], sizes = [2, 16], strides = [1, 1]} : vector<2x24xf32> to vector<2x16xf32>
    %407 = arith.addf %44, %406 : vector<2x16xf32>
    %408 = arith.negf %407 : vector<2x16xf32>
    %409 = math.exp %408 : vector<2x16xf32>
    %cst_8 = arith.constant 1.000000e+00 : f32
    %410 = vector.broadcast %cst_8 : f32 to vector<2x16xf32>
    %411 = arith.addf %410, %409 : vector<2x16xf32>
    %412 = arith.divf %410, %411 : vector<2x16xf32>
    %413 = vector.extract_strided_slice %412 {offsets = [0, 0], sizes = [2, 8], strides = [1, 1]} : vector<2x16xf32> to vector<2x8xf32>
    %414 = vector.extract_strided_slice %412 {offsets = [0, 8], sizes = [2, 8], strides = [1, 1]} : vector<2x16xf32> to vector<2x8xf32>
    %415 = vector.extract_strided_slice %405 {offsets = [0, 16], sizes = [2, 8], strides = [1, 1]} : vector<2x24xf32> to vector<2x8xf32>
    %416 = vector.broadcast %5 : vector<1x8xf32> to vector<2x8xf32>
    %417 = arith.addf %415, %416 : vector<2x8xf32>
    %418 = arith.mulf %413, %417 : vector<2x8xf32>
    %419 = arith.addf %92, %418 : vector<2x8xf32>
    %420 = math.tanh %419 : vector<2x8xf32>
    %421 = arith.subf %374, %420 : vector<2x8xf32>
    %422 = arith.mulf %414, %421 : vector<2x8xf32>
    %423 = arith.addf %420, %422 : vector<2x8xf32>
    %424 = vector.extract_strided_slice %423 {offsets = [0, 0], sizes = [2, 1], strides = [1, 1]} : vector<2x8xf32> to vector<2x1xf32>
    %425 = vector.broadcast %424 : vector<2x1xf32> to vector<2x24xf32>
    %426 = arith.mulf %425, %107 : vector<2x24xf32>
    %427 = vector.extract_strided_slice %423 {offsets = [0, 1], sizes = [2, 1], strides = [1, 1]} : vector<2x8xf32> to vector<2x1xf32>
    %428 = vector.broadcast %427 : vector<2x1xf32> to vector<2x24xf32>
    %429 = arith.mulf %428, %110 : vector<2x24xf32>
    %430 = vector.extract_strided_slice %423 {offsets = [0, 2], sizes = [2, 1], strides = [1, 1]} : vector<2x8xf32> to vector<2x1xf32>
    %431 = vector.broadcast %430 : vector<2x1xf32> to vector<2x24xf32>
    %432 = arith.mulf %431, %113 : vector<2x24xf32>
    %433 = vector.extract_strided_slice %423 {offsets = [0, 3], sizes = [2, 1], strides = [1, 1]} : vector<2x8xf32> to vector<2x1xf32>
    %434 = vector.broadcast %433 : vector<2x1xf32> to vector<2x24xf32>
    %435 = arith.mulf %434, %116 : vector<2x24xf32>
    %436 = vector.extract_strided_slice %423 {offsets = [0, 4], sizes = [2, 1], strides = [1, 1]} : vector<2x8xf32> to vector<2x1xf32>
    %437 = vector.broadcast %436 : vector<2x1xf32> to vector<2x24xf32>
    %438 = arith.mulf %437, %119 : vector<2x24xf32>
    %439 = vector.extract_strided_slice %423 {offsets = [0, 5], sizes = [2, 1], strides = [1, 1]} : vector<2x8xf32> to vector<2x1xf32>
    %440 = vector.broadcast %439 : vector<2x1xf32> to vector<2x24xf32>
    %441 = arith.mulf %440, %122 : vector<2x24xf32>
    %442 = vector.extract_strided_slice %423 {offsets = [0, 6], sizes = [2, 1], strides = [1, 1]} : vector<2x8xf32> to vector<2x1xf32>
    %443 = vector.broadcast %442 : vector<2x1xf32> to vector<2x24xf32>
    %444 = arith.mulf %443, %125 : vector<2x24xf32>
    %445 = vector.extract_strided_slice %423 {offsets = [0, 7], sizes = [2, 1], strides = [1, 1]} : vector<2x8xf32> to vector<2x1xf32>
    %446 = vector.broadcast %445 : vector<2x1xf32> to vector<2x24xf32>
    %447 = arith.mulf %446, %128 : vector<2x24xf32>
    %448 = arith.addf %426, %429 : vector<2x24xf32>
    %449 = arith.addf %432, %435 : vector<2x24xf32>
    %450 = arith.addf %438, %441 : vector<2x24xf32>
    %451 = arith.addf %444, %447 : vector<2x24xf32>
    %452 = arith.addf %448, %449 : vector<2x24xf32>
    %453 = arith.addf %450, %451 : vector<2x24xf32>
    %454 = arith.addf %452, %453 : vector<2x24xf32>
    %455 = vector.extract_strided_slice %454 {offsets = [0, 0], sizes = [2, 16], strides = [1, 1]} : vector<2x24xf32> to vector<2x16xf32>
    %456 = arith.addf %50, %455 : vector<2x16xf32>
    %457 = arith.negf %456 : vector<2x16xf32>
    %458 = math.exp %457 : vector<2x16xf32>
    %cst_9 = arith.constant 1.000000e+00 : f32
    %459 = vector.broadcast %cst_9 : f32 to vector<2x16xf32>
    %460 = arith.addf %459, %458 : vector<2x16xf32>
    %461 = arith.divf %459, %460 : vector<2x16xf32>
    %462 = vector.extract_strided_slice %461 {offsets = [0, 0], sizes = [2, 8], strides = [1, 1]} : vector<2x16xf32> to vector<2x8xf32>
    %463 = vector.extract_strided_slice %461 {offsets = [0, 8], sizes = [2, 8], strides = [1, 1]} : vector<2x16xf32> to vector<2x8xf32>
    %464 = vector.extract_strided_slice %454 {offsets = [0, 16], sizes = [2, 8], strides = [1, 1]} : vector<2x24xf32> to vector<2x8xf32>
    %465 = vector.broadcast %5 : vector<1x8xf32> to vector<2x8xf32>
    %466 = arith.addf %464, %465 : vector<2x8xf32>
    %467 = arith.mulf %462, %466 : vector<2x8xf32>
    %468 = arith.addf %98, %467 : vector<2x8xf32>
    %469 = math.tanh %468 : vector<2x8xf32>
    %470 = arith.subf %423, %469 : vector<2x8xf32>
    %471 = arith.mulf %463, %470 : vector<2x8xf32>
    %472 = arith.addf %469, %471 : vector<2x8xf32>
    %473 = vector.extract_strided_slice %472 {offsets = [0, 0], sizes = [2, 1], strides = [1, 1]} : vector<2x8xf32> to vector<2x1xf32>
    %474 = vector.broadcast %473 : vector<2x1xf32> to vector<2x24xf32>
    %475 = arith.mulf %474, %107 : vector<2x24xf32>
    %476 = vector.extract_strided_slice %472 {offsets = [0, 1], sizes = [2, 1], strides = [1, 1]} : vector<2x8xf32> to vector<2x1xf32>
    %477 = vector.broadcast %476 : vector<2x1xf32> to vector<2x24xf32>
    %478 = arith.mulf %477, %110 : vector<2x24xf32>
    %479 = vector.extract_strided_slice %472 {offsets = [0, 2], sizes = [2, 1], strides = [1, 1]} : vector<2x8xf32> to vector<2x1xf32>
    %480 = vector.broadcast %479 : vector<2x1xf32> to vector<2x24xf32>
    %481 = arith.mulf %480, %113 : vector<2x24xf32>
    %482 = vector.extract_strided_slice %472 {offsets = [0, 3], sizes = [2, 1], strides = [1, 1]} : vector<2x8xf32> to vector<2x1xf32>
    %483 = vector.broadcast %482 : vector<2x1xf32> to vector<2x24xf32>
    %484 = arith.mulf %483, %116 : vector<2x24xf32>
    %485 = vector.extract_strided_slice %472 {offsets = [0, 4], sizes = [2, 1], strides = [1, 1]} : vector<2x8xf32> to vector<2x1xf32>
    %486 = vector.broadcast %485 : vector<2x1xf32> to vector<2x24xf32>
    %487 = arith.mulf %486, %119 : vector<2x24xf32>
    %488 = vector.extract_strided_slice %472 {offsets = [0, 5], sizes = [2, 1], strides = [1, 1]} : vector<2x8xf32> to vector<2x1xf32>
    %489 = vector.broadcast %488 : vector<2x1xf32> to vector<2x24xf32>
    %490 = arith.mulf %489, %122 : vector<2x24xf32>
    %491 = vector.extract_strided_slice %472 {offsets = [0, 6], sizes = [2, 1], strides = [1, 1]} : vector<2x8xf32> to vector<2x1xf32>
    %492 = vector.broadcast %491 : vector<2x1xf32> to vector<2x24xf32>
    %493 = arith.mulf %492, %125 : vector<2x24xf32>
    %494 = vector.extract_strided_slice %472 {offsets = [0, 7], sizes = [2, 1], strides = [1, 1]} : vector<2x8xf32> to vector<2x1xf32>
    %495 = vector.broadcast %494 : vector<2x1xf32> to vector<2x24xf32>
    %496 = arith.mulf %495, %128 : vector<2x24xf32>
    %497 = arith.addf %475, %478 : vector<2x24xf32>
    %498 = arith.addf %481, %484 : vector<2x24xf32>
    %499 = arith.addf %487, %490 : vector<2x24xf32>
    %500 = arith.addf %493, %496 : vector<2x24xf32>
    %501 = arith.addf %497, %498 : vector<2x24xf32>
    %502 = arith.addf %499, %500 : vector<2x24xf32>
    %503 = arith.addf %501, %502 : vector<2x24xf32>
    %504 = vector.extract_strided_slice %503 {offsets = [0, 0], sizes = [2, 16], strides = [1, 1]} : vector<2x24xf32> to vector<2x16xf32>
    %505 = arith.addf %56, %504 : vector<2x16xf32>
    %506 = arith.negf %505 : vector<2x16xf32>
    %507 = math.exp %506 : vector<2x16xf32>
    %cst_10 = arith.constant 1.000000e+00 : f32
    %508 = vector.broadcast %cst_10 : f32 to vector<2x16xf32>
    %509 = arith.addf %508, %507 : vector<2x16xf32>
    %510 = arith.divf %508, %509 : vector<2x16xf32>
    %511 = vector.extract_strided_slice %510 {offsets = [0, 0], sizes = [2, 8], strides = [1, 1]} : vector<2x16xf32> to vector<2x8xf32>
    %512 = vector.extract_strided_slice %510 {offsets = [0, 8], sizes = [2, 8], strides = [1, 1]} : vector<2x16xf32> to vector<2x8xf32>
    %513 = vector.extract_strided_slice %503 {offsets = [0, 16], sizes = [2, 8], strides = [1, 1]} : vector<2x24xf32> to vector<2x8xf32>
    %514 = vector.broadcast %5 : vector<1x8xf32> to vector<2x8xf32>
    %515 = arith.addf %513, %514 : vector<2x8xf32>
    %516 = arith.mulf %511, %515 : vector<2x8xf32>
    %517 = arith.addf %104, %516 : vector<2x8xf32>
    %518 = math.tanh %517 : vector<2x8xf32>
    %519 = arith.subf %472, %518 : vector<2x8xf32>
    %520 = arith.mulf %512, %519 : vector<2x8xf32>
    %521 = arith.addf %518, %520 : vector<2x8xf32>
    %c0_11 = arith.constant 0 : index
    %c0_12 = arith.constant 0 : index
    %522 = vector.load %arg2[%c0_11, %c0_12] : memref<2x8xf32, #tpu.memory_space<vmem>>, vector<2x8xf32>
    tpu.vector_store %arg2[%c0_11, %c0_12], %521 {strides = array<i32>} : memref<2x8xf32, #tpu.memory_space<vmem>>, vector<2x8xf32>,
    return
  }
}

</mosaic_0001>

<llo_original>
// kernel: tpu_custom_call.1
$region0: #{tpu_custom_call.1}
  #allocation0 [shape = 'u32[]', space=smem, size = 0x4, offset = 0x4, fixed_abs, tag = 'smem constant byte address 0x4 - core index']
  #allocation1 [shape = 'u32[144,128]{1,0:T(1,128)}', space=vmem, size = 0x12000, scoped, tag = 'internal scratch']
  %s0 = inlined_call_operand.hbm [shape: f32[2,8], index: 0, kind: input, shape index: {}]
  %s1 = inlined_call_operand.hbm [shape: f32[16,24], index: 1, kind: input, shape index: {}]
  %s2 = inlined_call_operand.hbm [shape: f32[2,8], index: 2, kind: output, shape index: {}]
  %s3 = sld [smem:[#allocation0]]
  $region26: #{tpu_custom_call.1} parent=0
    _
  %s5 = ssub.s32 1, %s3
  %s6 = scalar_select 0, %s5, %s3
  $region1: #{tpu_custom_call.1} parent=0
    #allocation2 [shape = 'u8[1024]{0}', space=vmem, size = 0x400, scoped, tag = 'input window, operand 0, single buffered']
    #allocation3 [shape = 's32[1]{0}', space=sflag, size = 0x4, scoped, tag = 'scoped memory for tpu_custom_call.1']
    #allocation4 [shape = 's32[1]{0}', space=sflag, size = 0x4, scoped, tag = 'scoped memory for tpu_custom_call.1']
    #allocation5 [shape = 'u8[8192]{0}', space=vmem, size = 0x2000, scoped, tag = 'input window, operand 1, single buffered']
    #allocation6 [shape = 's32[1]{0}', space=sflag, size = 0x4, scoped, tag = 'scoped memory for tpu_custom_call.1']
    #allocation7 [shape = 'u8[1024]{0}', space=vmem, size = 0x400, scoped, tag = 'output window, operand 0, single buffered']
    %7 = vsyncpa [#allocation3], 0
    %8 = vsyncpa [#allocation6], 0
    %9 = vsyncpa [#allocation4], 0
    // Predicated region
    $region2: #{tpu_custom_call.1} parent=1 // pred_check
      _
    $region3: #{tpu_custom_call.1} parent=1 // pred_check_branch
      %11 = sbr.rel (0) target = $region5
    $region4: #{tpu_custom_call.1} parent=1 // pred_region
      %s13 = ssub.s32 32, 32
      %14 = vsyncadd [#allocation3], %s13
      %s16 = sshll.u32 [#allocation2], 4
      %s17 = int_to_ptr.vmem [resolvable:$true] %s16
      %19 = dma.hbm_to_vmem [thread:$0]  %s0, 32, %s17, [#allocation3]
    $region5: #{tpu_custom_call.1} parent=1 // pred_fallthru
      _
    // Predicated region
    $region6: #{tpu_custom_call.1} parent=1 // pred_check
      _
    $region7: #{tpu_custom_call.1} parent=1 // pred_check_branch
      %21 = sbr.rel (0) target = $region9
    $region8: #{tpu_custom_call.1} parent=1 // pred_region
      %s23 = ssub.s32 256, 256
      %24 = vsyncadd [#allocation6], %s23
      %s25 = sshll.u32 [#allocation5], 4
      %s26 = int_to_ptr.vmem [resolvable:$true] %s25
      %31 = dma.hbm_to_vmem [thread:$0]  %s1, 256, %s26, [#allocation6], 128, 128, 8
    $region9: #{tpu_custom_call.1} parent=1 // pred_fallthru
      _
    // Predicated region
    $region10: #{tpu_custom_call.1} parent=1 // pred_check
      _
    $region11: #{tpu_custom_call.1} parent=1 // pred_check_branch
      %33 = sbr.rel (0) target = $region13
    $region12: #{tpu_custom_call.1} parent=1 // pred_region
      %34 = dma.done [#allocation3], 32
    $region13: #{tpu_custom_call.1} parent=1 // pred_fallthru
      _
    // Predicated region
    $region14: #{tpu_custom_call.1} parent=1 // pred_check
      _
    $region15: #{tpu_custom_call.1} parent=1 // pred_check_branch
      %36 = sbr.rel (0) target = $region17
    $region16: #{tpu_custom_call.1} parent=1 // pred_region
      %37 = dma.done [#allocation6], 256
    $region17: #{tpu_custom_call.1} parent=1 // pred_fallthru
      _
    %v38 = vld [vmem:[#allocation5] sm:$0xff]
    %v39 = vld [vmem:[#allocation5 + $0x8] sm:$0xff]
    %v40 = vld [vmem:[#allocation2] sm:$0x3]
    %42 = vset.pattern.permute.xlu0 0
    %43 = vperm.xlu0 %42, %v40
    %v44 = vpop.permute.xlu0 %43
    %v46 = vlaneseq
    %v47 = vshrl.u32 %v46, 7
    %v48 = vsub.s32 0, %v47
    %v49 = vrot.slane %v39, %v48
    %v50 = vmul.f32 %v44, %v49
    %v51 = vlaneseq
    %v52 = vshrl.u32 %v51, 7
    %v53 = vsub.s32 1, %v52
    %v54 = vrot.slane %v39, %v53
    %v55 = vadd.f32 %v50, %v54
    %56 = vset.pattern.permute.xlu0 1
    %57 = vperm.xlu0 %56, %v40
    %v58 = vpop.permute.xlu0 %57
    %v60 = vmul.f32 %v58, %v49
    %v61 = vadd.f32 %v60, %v54
    %62 = vset.pattern.permute.xlu0 2
    %63 = vperm.xlu0 %62, %v40
    %v64 = vpop.permute.xlu0 %63
    %v66 = vmul.f32 %v64, %v49
    %v67 = vadd.f32 %v66, %v54
    %68 = vset.pattern.permute.xlu0 3
    %69 = vperm.xlu0 %68, %v40
    %v70 = vpop.permute.xlu0 %69
    %v72 = vmul.f32 %v70, %v49
    %v73 = vadd.f32 %v72, %v54
    %74 = vset.pattern.permute.xlu0 4
    %75 = vperm.xlu0 %74, %v40
    %v76 = vpop.permute.xlu0 %75
    %v78 = vmul.f32 %v76, %v49
    %v79 = vadd.f32 %v78, %v54
    %80 = vset.pattern.permute.xlu0 5
    %81 = vperm.xlu0 %80, %v40
    %v82 = vpop.permute.xlu0 %81
    %v84 = vmul.f32 %v82, %v49
    %v85 = vadd.f32 %v84, %v54
    %86 = vset.pattern.permute.xlu0 6
    %87 = vperm.xlu0 %86, %v40
    %v88 = vpop.permute.xlu0 %87
    %v90 = vmul.f32 %v88, %v49
    %v91 = vadd.f32 %v90, %v54
    %92 = vset.pattern.permute.xlu0 7
    %93 = vperm.xlu0 %92, %v40
    %v94 = vpop.permute.xlu0 %93
    %v96 = vmul.f32 %v94, %v49
    %v97 = vadd.f32 %v96, %v54
    %v98 = vlaneseq
    %v99 = vshrl.u32 %v98, 7
    %v100 = vsub.s32 2, %v99
    %v101 = vrot.slane %v39, %v100
    %103 = vrot.lane.b32.xlu0 %v101, 16
    %v104 = vpop.permute.xlu0 %103
    %v106 = vadd.f32 %v50, %v104
    %v107 = vadd.f32 %v60, %v104
    %v108 = vadd.f32 %v66, %v104
    %v109 = vadd.f32 %v72, %v104
    %v110 = vadd.f32 %v78, %v104
    %v111 = vadd.f32 %v84, %v104
    %v112 = vadd.f32 %v90, %v104
    %v113 = vadd.f32 %v96, %v104
    %v114 = vlaneseq
    %v115 = vshrl.u32 %v114, 7
    %v116 = vsub.s32 0, %v115
    %v117 = vrot.slane %v38, %v116
    %v118 = vlaneseq
    %v119 = vshrl.u32 %v118, 7
    %v120 = vsub.s32 1, %v119
    %v121 = vrot.slane %v38, %v120
    %v122 = vlaneseq
    %v123 = vshrl.u32 %v122, 7
    %v124 = vsub.s32 2, %v123
    %v125 = vrot.slane %v38, %v124
    %v126 = vlaneseq
    %v127 = vshrl.u32 %v126, 7
    %v128 = vsub.s32 3, %v127
    %v129 = vrot.slane %v38, %v128
    %v130 = vlaneseq
    %v131 = vshrl.u32 %v130, 7
    %v132 = vsub.s32 4, %v131
    %v133 = vrot.slane %v38, %v132
    %v134 = vlaneseq
    %v135 = vshrl.u32 %v134, 7
    %v136 = vsub.s32 5, %v135
    %v137 = vrot.slane %v38, %v136
    %v138 = vlaneseq
    %v139 = vshrl.u32 %v138, 7
    %v140 = vsub.s32 6, %v139
    %v141 = vrot.slane %v38, %v140
    %v142 = vlaneseq
    %v143 = vshrl.u32 %v142, 7
    %v144 = vsub.s32 7, %v143
    %v145 = vrot.slane %v38, %v144
    %v146 = vmul.f32 %v117, 0.0
    %v147 = vmul.f32 %v121, 0.0
    %v148 = vmul.f32 %v125, 0.0
    %v149 = vmul.f32 %v129, 0.0
    %v150 = vmul.f32 %v133, 0.0
    %v151 = vmul.f32 %v137, 0.0
    %v152 = vmul.f32 %v141, 0.0
    %v153 = vmul.f32 %v145, 0.0
    %v154 = vadd.f32 %v146, %v147
    %v155 = vadd.f32 %v148, %v149
    %v156 = vadd.f32 %v150, %v151
    %v157 = vadd.f32 %v152, %v153
    %v158 = vadd.f32 %v154, %v155
    %v159 = vadd.f32 %v156, %v157
    %v160 = vadd.f32 %v158, %v159
    %v161 = vadd.f32 %v55, %v160
    %v162 = vxor.u32 %v161, 2147483648
    %v163 = vmul.f32 %v162, 1.442695
    %v164 = vpow.pop %v163
    %v165 = vadd.f32 %v164, 1.0
    %v166 = vrcp.pop %v165
    %v167 = vmul.f32 1.0, %v166
    %v168 = vlaneseq
    %v169 = vshrl.u32 %v168, 7
    %v170 = vsub.s32 3, %v169
    %v171 = vrot.slane %v39, %v170
    %173 = vrot.lane.b32.xlu0 %v171, 16
    %v174 = vpop.permute.xlu0 %173
    %v176 = vadd.f32 %v160, %v174
    %178 = vrot.lane.b32.xlu0 %v176, 112
    %v179 = vpop.permute.xlu0 %178
    %v181 = vmul.f32 %v167, %v179
    %183 = vrot.lane.b32.xlu0 %v181, 16
    %v184 = vpop.permute.xlu0 %183
    %v186 = vadd.f32 %v106, %v184
    %v187 = vtanh.pop %v186
    %v188 = vsub.f32 0.0, %v187
    %190 = vrot.lane.b32.xlu0 %v188, 120
    %v191 = vpop.permute.xlu0 %190
    %v193 = vmul.f32 %v167, %v191
    %195 = vrot.lane.b32.xlu0 %v193, 8
    %v196 = vpop.permute.xlu0 %195
    %v198 = vadd.f32 %v187, %v196
    %200 = vset.pattern.permute.xlu0 16
    %201 = vperm.xlu0 %200, %v198
    %v202 = vpop.permute.xlu0 %201
    %v204 = vmul.f32 %v202, %v117
    %205 = vset.pattern.permute.xlu0 17
    %206 = vperm.xlu0 %205, %v198
    %v207 = vpop.permute.xlu0 %206
    %v209 = vmul.f32 %v207, %v121
    %210 = vset.pattern.permute.xlu0 18
    %211 = vperm.xlu0 %210, %v198
    %v212 = vpop.permute.xlu0 %211
    %v214 = vmul.f32 %v212, %v125
    %215 = vset.pattern.permute.xlu0 19
    %216 = vperm.xlu0 %215, %v198
    %v217 = vpop.permute.xlu0 %216
    %v219 = vmul.f32 %v217, %v129
    %220 = vset.pattern.permute.xlu0 20
    %221 = vperm.xlu0 %220, %v198
    %v222 = vpop.permute.xlu0 %221
    %v224 = vmul.f32 %v222, %v133
    %225 = vset.pattern.permute.xlu0 21
    %226 = vperm.xlu0 %225, %v198
    %v227 = vpop.permute.xlu0 %226
    %v229 = vmul.f32 %v227, %v137
    %230 = vset.pattern.permute.xlu0 22
    %231 = vperm.xlu0 %230, %v198
    %v232 = vpop.permute.xlu0 %231
    %v234 = vmul.f32 %v232, %v141
    %235 = vset.pattern.permute.xlu0 23
    %236 = vperm.xlu0 %235, %v198
    %v237 = vpop.permute.xlu0 %236
    %v239 = vmul.f32 %v237, %v145
    %v240 = vadd.f32 %v204, %v209
    %v241 = vadd.f32 %v214, %v219
    %v242 = vadd.f32 %v224, %v229
    %v243 = vadd.f32 %v234, %v239
    %v244 = vadd.f32 %v240, %v241
    %v245 = vadd.f32 %v242, %v243
    %v246 = vadd.f32 %v244, %v245
    %v247 = vadd.f32 %v61, %v246
    %v248 = vxor.u32 %v247, 2147483648
    %v249 = vmul.f32 %v248, 1.442695
    %v250 = vpow.pop %v249
    %v251 = vadd.f32 %v250, 1.0
    %v252 = vrcp.pop %v251
    %v253 = vmul.f32 1.0, %v252
    %v254 = vadd.f32 %v246, %v174
    %256 = vrot.lane.b32.xlu0 %v254, 112
    %v257 = vpop.permute.xlu0 %256
    %v259 = vmul.f32 %v253, %v257
    %261 = vrot.lane.b32.xlu0 %v259, 16
    %v262 = vpop.permute.xlu0 %261
    %v264 = vadd.f32 %v107, %v262
    %v265 = vtanh.pop %v264
    %v266 = vsub.f32 %v198, %v265
    %268 = vrot.lane.b32.xlu0 %v266, 120
    %v269 = vpop.permute.xlu0 %268
    %v271 = vmul.f32 %v253, %v269
    %273 = vrot.lane.b32.xlu0 %v271, 8
    %v274 = vpop.permute.xlu0 %273
    %v276 = vadd.f32 %v265, %v274
    %278 = vset.pattern.permute.xlu0 16
    %279 = vperm.xlu0 %278, %v276
    %v280 = vpop.permute.xlu0 %279
    %v282 = vmul.f32 %v280, %v117
    %283 = vset.pattern.permute.xlu0 17
    %284 = vperm.xlu0 %283, %v276
    %v285 = vpop.permute.xlu0 %284
    %v287 = vmul.f32 %v285, %v121
    %288 = vset.pattern.permute.xlu0 18
    %289 = vperm.xlu0 %288, %v276
    %v290 = vpop.permute.xlu0 %289
    %v292 = vmul.f32 %v290, %v125
    %293 = vset.pattern.permute.xlu0 19
    %294 = vperm.xlu0 %293, %v276
    %v295 = vpop.permute.xlu0 %294
    %v297 = vmul.f32 %v295, %v129
    %298 = vset.pattern.permute.xlu0 20
    %299 = vperm.xlu0 %298, %v276
    %v300 = vpop.permute.xlu0 %299
    %v302 = vmul.f32 %v300, %v133
    %303 = vset.pattern.permute.xlu0 21
    %304 = vperm.xlu0 %303, %v276
    %v305 = vpop.permute.xlu0 %304
    %v307 = vmul.f32 %v305, %v137
    %308 = vset.pattern.permute.xlu0 22
    %309 = vperm.xlu0 %308, %v276
    %v310 = vpop.permute.xlu0 %309
    %v312 = vmul.f32 %v310, %v141
    %313 = vset.pattern.permute.xlu0 23
    %314 = vperm.xlu0 %313, %v276
    %v315 = vpop.permute.xlu0 %314
    %v317 = vmul.f32 %v315, %v145
    %v318 = vadd.f32 %v282, %v287
    %v319 = vadd.f32 %v292, %v297
    %v320 = vadd.f32 %v302, %v307
    %v321 = vadd.f32 %v312, %v317
    %v322 = vadd.f32 %v318, %v319
    %v323 = vadd.f32 %v320, %v321
    %v324 = vadd.f32 %v322, %v323
    %v325 = vadd.f32 %v67, %v324
    %v326 = vxor.u32 %v325, 2147483648
    %v327 = vmul.f32 %v326, 1.442695
    %v328 = vpow.pop %v327
    %v329 = vadd.f32 %v328, 1.0
    %v330 = vrcp.pop %v329
    %v331 = vmul.f32 1.0, %v330
    %v332 = vadd.f32 %v324, %v174
    %334 = vrot.lane.b32.xlu0 %v332, 112
    %v335 = vpop.permute.xlu0 %334
    %v337 = vmul.f32 %v331, %v335
    %339 = vrot.lane.b32.xlu0 %v337, 16
    %v340 = vpop.permute.xlu0 %339
    %v342 = vadd.f32 %v108, %v340
    %v343 = vtanh.pop %v342
    %v344 = vsub.f32 %v276, %v343
    %346 = vrot.lane.b32.xlu0 %v344, 120
    %v347 = vpop.permute.xlu0 %346
    %v349 = vmul.f32 %v331, %v347
    %351 = vrot.lane.b32.xlu0 %v349, 8
    %v352 = vpop.permute.xlu0 %351
    %v354 = vadd.f32 %v343, %v352
    %356 = vset.pattern.permute.xlu0 16
    %357 = vperm.xlu0 %356, %v354
    %v358 = vpop.permute.xlu0 %357
    %v360 = vmul.f32 %v358, %v117
    %361 = vset.pattern.permute.xlu0 17
    %362 = vperm.xlu0 %361, %v354
    %v363 = vpop.permute.xlu0 %362
    %v365 = vmul.f32 %v363, %v121
    %366 = vset.pattern.permute.xlu0 18
    %367 = vperm.xlu0 %366, %v354
    %v368 = vpop.permute.xlu0 %367
    %v370 = vmul.f32 %v368, %v125
    %371 = vset.pattern.permute.xlu0 19
    %372 = vperm.xlu0 %371, %v354
    %v373 = vpop.permute.xlu0 %372
    %v375 = vmul.f32 %v373, %v129
    %376 = vset.pattern.permute.xlu0 20
    %377 = vperm.xlu0 %376, %v354
    %v378 = vpop.permute.xlu0 %377
    %v380 = vmul.f32 %v378, %v133
    %381 = vset.pattern.permute.xlu0 21
    %382 = vperm.xlu0 %381, %v354
    %v383 = vpop.permute.xlu0 %382
    %v385 = vmul.f32 %v383, %v137
    %386 = vset.pattern.permute.xlu0 22
    %387 = vperm.xlu0 %386, %v354
    %v388 = vpop.permute.xlu0 %387
    %v390 = vmul.f32 %v388, %v141
    %391 = vset.pattern.permute.xlu0 23
    %392 = vperm.xlu0 %391, %v354
    %v393 = vpop.permute.xlu0 %392
    %v395 = vmul.f32 %v393, %v145
    %v396 = vadd.f32 %v360, %v365
    %v397 = vadd.f32 %v370, %v375
    %v398 = vadd.f32 %v380, %v385
    %v399 = vadd.f32 %v390, %v395
    %v400 = vadd.f32 %v396, %v397
    %v401 = vadd.f32 %v398, %v399
    %v402 = vadd.f32 %v400, %v401
    %v403 = vadd.f32 %v73, %v402
    %v404 = vxor.u32 %v403, 2147483648
    %v405 = vmul.f32 %v404, 1.442695
    %v406 = vpow.pop %v405
    %v407 = vadd.f32 %v406, 1.0
    %v408 = vrcp.pop %v407
    %v409 = vmul.f32 1.0, %v408
    %v410 = vadd.f32 %v402, %v174
    %412 = vrot.lane.b32.xlu0 %v410, 112
    %v413 = vpop.permute.xlu0 %412
    %v415 = vmul.f32 %v409, %v413
    %417 = vrot.lane.b32.xlu0 %v415, 16
    %v418 = vpop.permute.xlu0 %417
    %v420 = vadd.f32 %v109, %v418
    %v421 = vtanh.pop %v420
    %v422 = vsub.f32 %v354, %v421
    %424 = vrot.lane.b32.xlu0 %v422, 120
    %v425 = vpop.permute.xlu0 %424
    %v427 = vmul.f32 %v409, %v425
    %429 = vrot.lane.b32.xlu0 %v427, 8
    %v430 = vpop.permute.xlu0 %429
    %v432 = vadd.f32 %v421, %v430
    %434 = vset.pattern.permute.xlu0 16
    %435 = vperm.xlu0 %434, %v432
    %v436 = vpop.permute.xlu0 %435
    %v438 = vmul.f32 %v436, %v117
    %439 = vset.pattern.permute.xlu0 17
    %440 = vperm.xlu0 %439, %v432
    %v441 = vpop.permute.xlu0 %440
    %v443 = vmul.f32 %v441, %v121
    %444 = vset.pattern.permute.xlu0 18
    %445 = vperm.xlu0 %444, %v432
    %v446 = vpop.permute.xlu0 %445
    %v448 = vmul.f32 %v446, %v125
    %449 = vset.pattern.permute.xlu0 19
    %450 = vperm.xlu0 %449, %v432
    %v451 = vpop.permute.xlu0 %450
    %v453 = vmul.f32 %v451, %v129
    %454 = vset.pattern.permute.xlu0 20
    %455 = vperm.xlu0 %454, %v432
    %v456 = vpop.permute.xlu0 %455
    %v458 = vmul.f32 %v456, %v133
    %459 = vset.pattern.permute.xlu0 21
    %460 = vperm.xlu0 %459, %v432
    %v461 = vpop.permute.xlu0 %460
    %v463 = vmul.f32 %v461, %v137
    %464 = vset.pattern.permute.xlu0 22
    %465 = vperm.xlu0 %464, %v432
    %v466 = vpop.permute.xlu0 %465
    %v468 = vmul.f32 %v466, %v141
    %469 = vset.pattern.permute.xlu0 23
    %470 = vperm.xlu0 %469, %v432
    %v471 = vpop.permute.xlu0 %470
    %v473 = vmul.f32 %v471, %v145
    %v474 = vadd.f32 %v438, %v443
    %v475 = vadd.f32 %v448, %v453
    %v476 = vadd.f32 %v458, %v463
    %v477 = vadd.f32 %v468, %v473
    %v478 = vadd.f32 %v474, %v475
    %v479 = vadd.f32 %v476, %v477
    %v480 = vadd.f32 %v478, %v479
    %v481 = vadd.f32 %v79, %v480
    %v482 = vxor.u32 %v481, 2147483648
    %v483 = vmul.f32 %v482, 1.442695
    %v484 = vpow.pop %v483
    %v485 = vadd.f32 %v484, 1.0
    %v486 = vrcp.pop %v485
    %v487 = vmul.f32 1.0, %v486
    %v488 = vadd.f32 %v480, %v174
    %490 = vrot.lane.b32.xlu0 %v488, 112
    %v491 = vpop.permute.xlu0 %490
    %v493 = vmul.f32 %v487, %v491
    %495 = vrot.lane.b32.xlu0 %v493, 16
    %v496 = vpop.permute.xlu0 %495
    %v498 = vadd.f32 %v110, %v496
    %v499 = vtanh.pop %v498
    %v500 = vsub.f32 %v432, %v499
    %502 = vrot.lane.b32.xlu0 %v500, 120
    %v503 = vpop.permute.xlu0 %502
    %v505 = vmul.f32 %v487, %v503
    %507 = vrot.lane.b32.xlu0 %v505, 8
    %v508 = vpop.permute.xlu0 %507
    %v510 = vadd.f32 %v499, %v508
    %512 = vset.pattern.permute.xlu0 16
    %513 = vperm.xlu0 %512, %v510
    %v514 = vpop.permute.xlu0 %513
    %v516 = vmul.f32 %v514, %v117
    %517 = vset.pattern.permute.xlu0 17
    %518 = vperm.xlu0 %517, %v510
    %v519 = vpop.permute.xlu0 %518
    %v521 = vmul.f32 %v519, %v121
    %522 = vset.pattern.permute.xlu0 18
    %523 = vperm.xlu0 %522, %v510
    %v524 = vpop.permute.xlu0 %523
    %v526 = vmul.f32 %v524, %v125
    %527 = vset.pattern.permute.xlu0 19
    %528 = vperm.xlu0 %527, %v510
    %v529 = vpop.permute.xlu0 %528
    %v531 = vmul.f32 %v529, %v129
    %532 = vset.pattern.permute.xlu0 20
    %533 = vperm.xlu0 %532, %v510
    %v534 = vpop.permute.xlu0 %533
    %v536 = vmul.f32 %v534, %v133
    %537 = vset.pattern.permute.xlu0 21
    %538 = vperm.xlu0 %537, %v510
    %v539 = vpop.permute.xlu0 %538
    %v541 = vmul.f32 %v539, %v137
    %542 = vset.pattern.permute.xlu0 22
    %543 = vperm.xlu0 %542, %v510
    %v544 = vpop.permute.xlu0 %543
    %v546 = vmul.f32 %v544, %v141
    %547 = vset.pattern.permute.xlu0 23
    %548 = vperm.xlu0 %547, %v510
    %v549 = vpop.permute.xlu0 %548
    %v551 = vmul.f32 %v549, %v145
    %v552 = vadd.f32 %v516, %v521
    %v553 = vadd.f32 %v526, %v531
    %v554 = vadd.f32 %v536, %v541
    %v555 = vadd.f32 %v546, %v551
    %v556 = vadd.f32 %v552, %v553
    %v557 = vadd.f32 %v554, %v555
    %v558 = vadd.f32 %v556, %v557
    %v559 = vadd.f32 %v85, %v558
    %v560 = vxor.u32 %v559, 2147483648
    %v561 = vmul.f32 %v560, 1.442695
    %v562 = vpow.pop %v561
    %v563 = vadd.f32 %v562, 1.0
    %v564 = vrcp.pop %v563
    %v565 = vmul.f32 1.0, %v564
    %v566 = vadd.f32 %v558, %v174
    %568 = vrot.lane.b32.xlu0 %v566, 112
    %v569 = vpop.permute.xlu0 %568
    %v571 = vmul.f32 %v565, %v569
    %573 = vrot.lane.b32.xlu0 %v571, 16
    %v574 = vpop.permute.xlu0 %573
    %v576 = vadd.f32 %v111, %v574
    %v577 = vtanh.pop %v576
    %v578 = vsub.f32 %v510, %v577
    %580 = vrot.lane.b32.xlu0 %v578, 120
    %v581 = vpop.permute.xlu0 %580
    %v583 = vmul.f32 %v565, %v581
    %585 = vrot.lane.b32.xlu0 %v583, 8
    %v586 = vpop.permute.xlu0 %585
    %v588 = vadd.f32 %v577, %v586
    %590 = vset.pattern.permute.xlu0 16
    %591 = vperm.xlu0 %590, %v588
    %v592 = vpop.permute.xlu0 %591
    %v594 = vmul.f32 %v592, %v117
    %595 = vset.pattern.permute.xlu0 17
    %596 = vperm.xlu0 %595, %v588
    %v597 = vpop.permute.xlu0 %596
    %v599 = vmul.f32 %v597, %v121
    %600 = vset.pattern.permute.xlu0 18
    %601 = vperm.xlu0 %600, %v588
    %v602 = vpop.permute.xlu0 %601
    %v604 = vmul.f32 %v602, %v125
    %605 = vset.pattern.permute.xlu0 19
    %606 = vperm.xlu0 %605, %v588
    %v607 = vpop.permute.xlu0 %606
    %v609 = vmul.f32 %v607, %v129
    %610 = vset.pattern.permute.xlu0 20
    %611 = vperm.xlu0 %610, %v588
    %v612 = vpop.permute.xlu0 %611
    %v614 = vmul.f32 %v612, %v133
    %615 = vset.pattern.permute.xlu0 21
    %616 = vperm.xlu0 %615, %v588
    %v617 = vpop.permute.xlu0 %616
    %v619 = vmul.f32 %v617, %v137
    %620 = vset.pattern.permute.xlu0 22
    %621 = vperm.xlu0 %620, %v588
    %v622 = vpop.permute.xlu0 %621
    %v624 = vmul.f32 %v622, %v141
    %625 = vset.pattern.permute.xlu0 23
    %626 = vperm.xlu0 %625, %v588
    %v627 = vpop.permute.xlu0 %626
    %v629 = vmul.f32 %v627, %v145
    %v630 = vadd.f32 %v594, %v599
    %v631 = vadd.f32 %v604, %v609
    %v632 = vadd.f32 %v614, %v619
    %v633 = vadd.f32 %v624, %v629
    %v634 = vadd.f32 %v630, %v631
    %v635 = vadd.f32 %v632, %v633
    %v636 = vadd.f32 %v634, %v635
    %v637 = vadd.f32 %v91, %v636
    %v638 = vxor.u32 %v637, 2147483648
    %v639 = vmul.f32 %v638, 1.442695
    %v640 = vpow.pop %v639
    %v641 = vadd.f32 %v640, 1.0
    %v642 = vrcp.pop %v641
    %v643 = vmul.f32 1.0, %v642
    %v644 = vadd.f32 %v636, %v174
    %646 = vrot.lane.b32.xlu0 %v644, 112
    %v647 = vpop.permute.xlu0 %646
    %v649 = vmul.f32 %v643, %v647
    %651 = vrot.lane.b32.xlu0 %v649, 16
    %v652 = vpop.permute.xlu0 %651
    %v654 = vadd.f32 %v112, %v652
    %v655 = vtanh.pop %v654
    %v656 = vsub.f32 %v588, %v655
    %658 = vrot.lane.b32.xlu0 %v656, 120
    %v659 = vpop.permute.xlu0 %658
    %v661 = vmul.f32 %v643, %v659
    %663 = vrot.lane.b32.xlu0 %v661, 8
    %v664 = vpop.permute.xlu0 %663
    %v666 = vadd.f32 %v655, %v664
    %668 = vset.pattern.permute.xlu0 16
    %669 = vperm.xlu0 %668, %v666
    %v670 = vpop.permute.xlu0 %669
    %v672 = vmul.f32 %v670, %v117
    %673 = vset.pattern.permute.xlu0 17
    %674 = vperm.xlu0 %673, %v666
    %v675 = vpop.permute.xlu0 %674
    %v677 = vmul.f32 %v675, %v121
    %678 = vset.pattern.permute.xlu0 18
    %679 = vperm.xlu0 %678, %v666
    %v680 = vpop.permute.xlu0 %679
    %v682 = vmul.f32 %v680, %v125
    %683 = vset.pattern.permute.xlu0 19
    %684 = vperm.xlu0 %683, %v666
    %v685 = vpop.permute.xlu0 %684
    %v687 = vmul.f32 %v685, %v129
    %688 = vset.pattern.permute.xlu0 20
    %689 = vperm.xlu0 %688, %v666
    %v690 = vpop.permute.xlu0 %689
    %v692 = vmul.f32 %v690, %v133
    %693 = vset.pattern.permute.xlu0 21
    %694 = vperm.xlu0 %693, %v666
    %v695 = vpop.permute.xlu0 %694
    %v697 = vmul.f32 %v695, %v137
    %698 = vset.pattern.permute.xlu0 22
    %699 = vperm.xlu0 %698, %v666
    %v700 = vpop.permute.xlu0 %699
    %v702 = vmul.f32 %v700, %v141
    %703 = vset.pattern.permute.xlu0 23
    %704 = vperm.xlu0 %703, %v666
    %v705 = vpop.permute.xlu0 %704
    %v707 = vmul.f32 %v705, %v145
    %v708 = vadd.f32 %v672, %v677
    %v709 = vadd.f32 %v682, %v687
    %v710 = vadd.f32 %v692, %v697
    %v711 = vadd.f32 %v702, %v707
    %v712 = vadd.f32 %v708, %v709
    %v713 = vadd.f32 %v710, %v711
    %v714 = vadd.f32 %v712, %v713
    %v715 = vadd.f32 %v97, %v714
    %v716 = vxor.u32 %v715, 2147483648
    %v717 = vmul.f32 %v716, 1.442695
    %v718 = vpow.pop %v717
    %v719 = vadd.f32 %v718, 1.0
    %v720 = vrcp.pop %v719
    %v721 = vmul.f32 1.0, %v720
    %v722 = vadd.f32 %v714, %v174
    %724 = vrot.lane.b32.xlu0 %v722, 112
    %v725 = vpop.permute.xlu0 %724
    %v727 = vmul.f32 %v721, %v725
    %729 = vrot.lane.b32.xlu0 %v727, 16
    %v730 = vpop.permute.xlu0 %729
    %v732 = vadd.f32 %v113, %v730
    %v733 = vtanh.pop %v732
    %v734 = vsub.f32 %v666, %v733
    %736 = vrot.lane.b32.xlu0 %v734, 120
    %v737 = vpop.permute.xlu0 %736
    %v739 = vmul.f32 %v721, %v737
    %741 = vrot.lane.b32.xlu0 %v739, 8
    %v742 = vpop.permute.xlu0 %741
    %v744 = vadd.f32 %v733, %v742
    %746 = vrot.lane.b32.xlu0 %v744, 112
    %v747 = vpop.permute.xlu0 %746
    %vm749 = vcmask 58368
    %750 = vst.msk [vmem:[#allocation7] sm:$0x3] %vm749, %v747
    // Predicated region
    $region18: #{tpu_custom_call.1} parent=1 // pred_check
      _
    $region19: #{tpu_custom_call.1} parent=1 // pred_check_branch
      %752 = sbr.rel (0) target = $region21
    $region20: #{tpu_custom_call.1} parent=1 // pred_region
      %s754 = ssub.s32 32, 32
      %755 = vsyncadd [#allocation4], %s754
      %s757 = sshll.u32 [#allocation7], 4
      %s758 = int_to_ptr.vmem [resolvable:$true] %s757
      %760 = dma.vmem_to_hbm [thread:$0]  %s758, 32, %s2, [#allocation4]
    $region21: #{tpu_custom_call.1} parent=1 // pred_fallthru
      _
    // Predicated region
    $region22: #{tpu_custom_call.1} parent=1 // pred_check
      _
    $region23: #{tpu_custom_call.1} parent=1 // pred_check_branch
      %762 = sbr.rel (0) target = $region25
    $region24: #{tpu_custom_call.1} parent=1 // pred_region
      %763 = dma.done [#allocation4], 32
    $region25: #{tpu_custom_call.1} parent=1 // pred_fallthru
      _
    %764 = vsyncpa [#allocation3], 1
    %765 = vsyncpa [#allocation6], 1
    %766 = vsyncpa [#allocation4], 1

</llo_original>
